<compile_context>
chip_gen: v7x
topology: tpu7x:2x2x1
jax: 0.10.0
libtpu: 0.0.40
codegen_flags: <defaults>
</compile_context>

<pallas_src>
import math
import jax
import jax.numpy as jnp
from jax.experimental import pallas as pl
from jax.experimental.pallas import tpu as pltpu

EPS = 1e-10


def _round_up(x, m):
    return (x + m - 1) // m * m


def _nalu_kernel(x_ref, rhs_ref, y_ref):
    """One batch tile.

    x_ref:   (Bt, K)      f32
    rhs_ref: (K, 2*Np)    f32   precomputed fused [G^T | W_eff], zero-padded cols
    y_ref:   (Bt, Np)     f32   lane-dense output tile
    """
    Np = rhs_ref.shape[1] // 2

    x = x_ref[...]                                                     # (Bt, K)

    # One MXU pass produces both the gate logits and the additive NAC output.
    ag = jnp.dot(x, rhs_ref[...], preferred_element_type=jnp.float32)  # (Bt, 2*Np)
    g = jax.nn.sigmoid(ag[:, :Np])                                     # gate
    a = ag[:, Np:]                                                     # a = nac(x)

    # Multiplicative path (kept fully in f32: exp amplifies log-space error).
    log_x = jnp.log(jnp.abs(x) + EPS)
    m = jnp.exp(jnp.dot(log_x, rhs_ref[:, Np:],
                        preferred_element_type=jnp.float32))           # (Bt, Np)

    y_ref[...] = g * a + (1.0 - g) * m


def prepare_nalu_params(G, W_hat, M_hat):
    """One-time (load-time) conversion from the PyTorch (out_dim, in_dim) layout to a
    single fused, lane-dense (in_dim, 2*Np) RHS with Np = round_up(out_dim, 128):
        rhs = [ G^T | tanh(W_hat^T) * sigmoid(M_hat^T) ]   (zero-padded columns)
    Padded columns are zero, so padded output lanes stay finite and are sliced off.
    For training (parameters changing every step) compute this with the same two
    lines as a tiny XLA op in the wrapper instead.
    """
    out_dim, in_dim = G.shape
    Np = _round_up(out_dim, 128)

    def prep(w):
        wt = jnp.asarray(w, jnp.float32).T                 # (in_dim, out_dim)
        return jnp.pad(wt, ((0, 0), (0, Np - out_dim)))    # (in_dim, Np)

    g_t = prep(G)
    w_eff = jnp.tanh(prep(W_hat)) * jax.nn.sigmoid(prep(M_hat))
    # Zero the padded columns of W_eff explicitly (tanh(0)*sigmoid(0)=0 already,
    # but keep it self-documenting and robust to future init changes).
    col = jnp.arange(Np)
    w_eff = jnp.where(col[None, :] < out_dim, w_eff, 0.0)
    rhs = jnp.concatenate([g_t, w_eff], axis=1)            # (in_dim, 2*Np)
    return rhs, out_dim


def _vmem_capacity_bytes():
    try:
        return int(pltpu.get_tpu_info().vmem_capacity_bytes)
    except Exception:
        return 64 << 20   # conservative (v7x per-TC VMEM)


def nalu_forward(x, rhs, out_dim, *, block_b=4096):
    """x: (B, in_dim) f32; rhs: (in_dim, 2*Np) from prepare_nalu_params."""
    x = jnp.asarray(x, jnp.float32)
    B, K = x.shape
    Np = rhs.shape[1] // 2

    # Batch tiling: pick n_tiles from the requested block size, then re-balance the
    # tile so padding waste is small; force Bt to a multiple of 8 (sublane rule).
    n_tiles = max(1, -(-B // max(1, block_b)))
    Bt = _round_up(-(-B // n_tiles), 8)
    B_pad = _round_up(B, Bt)
    if B_pad != B:
        # Pad with 1.0 so log(|x|+eps) ~ 0 in padded rows (no inf/nan anywhere).
        x = jnp.pad(x, ((0, B_pad - B), (0, 0)), constant_values=1.0)

    grid = (B_pad // Bt,)

    # Advisory cost estimate for XLA's scheduler.
    cost = pl.CostEstimate(
        flops=6 * B_pad * K * Np,                               # (B,K)x(K,2Np) + (B,K)x(K,Np)
        transcendentals=2 * B_pad * Np + B_pad * K,             # sigmoid, exp, log
        bytes_accessed=4 * (B_pad * K + 2 * K * Np + B_pad * Np),
    )

    # VMEM budget: double-buffered x/y tiles + (conservatively double-buffered)
    # resident fused RHS; clamp generation-aware (leave headroom below capacity).
    vmem_need = 4 * (2 * Bt * (K + Np) + 2 * K * 2 * Np)
    cap = _vmem_capacity_bytes()
    vmem_limit = min(max(2 * vmem_need + (2 << 20), 16 << 20), int(cap * 3 // 4))

    y_pad = pl.pallas_call(
        _nalu_kernel,
        out_shape=jax.ShapeDtypeStruct((B_pad, Np), jnp.float32),
        grid_spec=pltpu.PrefetchScalarGridSpec(
            num_scalar_prefetch=0,
            grid=grid,
            in_specs=[
                pl.BlockSpec((Bt, K), lambda i: (i, 0)),        # x tile, pipelined
                pl.BlockSpec((K, 2 * Np), lambda i: (0, 0)),    # fused RHS: constant
            ],                                                  #   block index -> resident
            out_specs=pl.BlockSpec((Bt, Np), lambda i: (i, 0)),
        ),
        compiler_params=pltpu.CompilerParams(
            # Batch tiles are fully independent now (no step-0 scratch carry), so
            # the axis can be sharded across v7x's two TensorCores.
            dimension_semantics=("parallel",),
            vmem_limit_bytes=vmem_limit,
        ),
        cost_estimate=cost,
    )(x, rhs)

    return y_pad[:B, :out_dim]


# ----------------------------------------------------------------------------- #
# Reference + demo
# ----------------------------------------------------------------------------- #
def _kaiming_uniform(key, shape, a=math.sqrt(5)):
    # Matches torch.nn.init.kaiming_uniform_ (fan_in = shape[1], leaky_relu gain).
    fan_in = shape[1]
    gain = math.sqrt(2.0 / (1.0 + a * a))
    bound = math.sqrt(3.0) * gain / math.sqrt(fan_in)
    return jax.random.uniform(key, shape, jnp.float32, -bound, bound)


def _reference(x, G, W_hat, M_hat):
    # Pure-JAX mirror of the PyTorch module (PyTorch (out_dim, in_dim) layout).
    w = jnp.tanh(W_hat) * jax.nn.sigmoid(M_hat)
    a = x @ w.T
    g = jax.nn.sigmoid(x @ G.T)
    m = jnp.exp(jnp.log(jnp.abs(x) + EPS) @ w.T)
    return g * a + (1.0 - g) * m


if __name__ == "__main__":
    in_dim, out_dim = 16, 32

    key = jax.random.PRNGKey(0)
    kx, kx2, kg, kw, km = jax.random.split(key, 5)

    # Deterministic parameter init ('Kai_uni' branch), PyTorch layout (out_dim, in_dim).
    G = _kaiming_uniform(kg, (out_dim, in_dim))
    W_hat = _kaiming_uniform(kw, (out_dim, in_dim))
    M_hat = _kaiming_uniform(km, (out_dim, in_dim))

    # One-time parameter prep: fused lane-dense RHS [G^T | W_eff].
    rhs, od = prepare_nalu_params(G, W_hat, M_hat)

    # Case 1: small batch, single grid step (default large block_b).
    x1 = jax.random.normal(kx, (8, in_dim), jnp.float32)
    y1 = jax.block_until_ready(nalu_forward(x1, rhs, od))
    y1_ref = _reference(x1, G, W_hat, M_hat)
    assert y1.shape == (8, out_dim)
    assert jnp.allclose(y1, y1_ref, atol=1e-4, rtol=1e-4), "case1 mismatch vs reference"

    # Case 2: multiple grid steps (small block_b forces several tiles) and a batch
    # that is not a multiple of the tile (exercises the re-balanced padding path).
    x2 = jax.random.normal(kx2, (21, in_dim), jnp.float32)
    y2 = jax.block_until_ready(nalu_forward(x2, rhs, od, block_b=8))
    y2_ref = _reference(x2, G, W_hat, M_hat)
    assert y2.shape == (21, out_dim)
    assert jnp.allclose(y2, y2_ref, atol=1e-4, rtol=1e-4), "case2 mismatch vs reference"

    print("KERNEL_OK")
</pallas_src>

<mosaic_0001>
module attributes {stable_mosaic.version = 11 : i64} {
  func.func @_nalu_kernel(%arg0: i32, %arg1: memref<8x16xf32, #tpu.memory_space<vmem>>, %arg2: memref<16x256xf32, #tpu.memory_space<vmem>>, %arg3: memref<8x128xf32, #tpu.memory_space<vmem>>) attributes {dimension_semantics = [#tpu.dimension_semantics<parallel>], iteration_bounds = array<i64: 1>, scalar_prefetch = 0 : i64, scratch_operands = 0 : i64, tpu.core_type = #tpu.core_type<tc>, window_params = [{transform_indices = @transform_0, window_bounds = array<i64: 8, 16>}, {pipeline_mode = #tpu.pipeline_mode<synchronous>, transform_indices = @transform_1, window_bounds = array<i64: 16, 256>}, {transform_indices = @transform_2, window_bounds = array<i64: 8, 128>}]} {
    %c0 = arith.constant 0 : index
    %c0_0 = arith.constant 0 : index
    %0 = vector.load %arg1[%c0, %c0_0] : memref<8x16xf32, #tpu.memory_space<vmem>>, vector<8x16xf32>
    %c0_1 = arith.constant 0 : index
    %c0_2 = arith.constant 0 : index
    %1 = vector.load %arg2[%c0_1, %c0_2] : memref<16x256xf32, #tpu.memory_space<vmem>>, vector<16x256xf32>
    %cst = arith.constant dense<0.000000e+00> : vector<8x256xf32>
    %2 = tpu.matmul %0, %1, %cst {dimension_numbers = #tpu.dot_dimension_numbers<[1], [0], [0], [1], [0, 0, 1, 1], [], []>} : vector<8x16xf32>, vector<16x256xf32>, vector<8x256xf32> -> vector<8x256xf32>
    %3 = vector.extract_strided_slice %2 {offsets = [0, 0], sizes = [8, 128], strides = [1, 1]} : vector<8x256xf32> to vector<8x128xf32>
    %4 = arith.negf %3 : vector<8x128xf32>
    %5 = math.exp %4 : vector<8x128xf32>
    %cst_3 = arith.constant 1.000000e+00 : f32
    %6 = vector.broadcast %cst_3 : f32 to vector<8x128xf32>
    %7 = arith.addf %6, %5 : vector<8x128xf32>
    %8 = arith.divf %6, %7 : vector<8x128xf32>
    %9 = vector.extract_strided_slice %2 {offsets = [0, 128], sizes = [8, 128], strides = [1, 1]} : vector<8x256xf32> to vector<8x128xf32>
    %10 = math.absf %0 : vector<8x16xf32>
    %cst_4 = arith.constant 1.000000e-10 : f32
    %11 = vector.broadcast %cst_4 : f32 to vector<8x16xf32>
    %12 = arith.addf %10, %11 : vector<8x16xf32>
    %13 = math.log %12 : vector<8x16xf32>
    %c0_5 = arith.constant 0 : index
    %c128 = arith.constant 128 : index
    %14 = vector.load %arg2[%c0_5, %c128] : memref<16x256xf32, #tpu.memory_space<vmem>>, vector<16x128xf32>
    %cst_6 = arith.constant dense<0.000000e+00> : vector<8x128xf32>
    %15 = tpu.matmul %13, %14, %cst_6 {dimension_numbers = #tpu.dot_dimension_numbers<[1], [0], [0], [1], [0, 0, 1, 1], [], []>} : vector<8x16xf32>, vector<16x128xf32>, vector<8x128xf32> -> vector<8x128xf32>
    %16 = math.exp %15 : vector<8x128xf32>
    %17 = arith.mulf %8, %9 : vector<8x128xf32>
    %cst_7 = arith.constant 1.000000e+00 : f32
    %18 = vector.broadcast %cst_7 : f32 to vector<8x128xf32>
    %19 = arith.subf %18, %8 : vector<8x128xf32>
    %20 = arith.mulf %19, %16 : vector<8x128xf32>
    %21 = arith.addf %17, %20 : vector<8x128xf32>
    %c0_8 = arith.constant 0 : index
    %c0_9 = arith.constant 0 : index
    %22 = vector.load %arg3[%c0_8, %c0_9] : memref<8x128xf32, #tpu.memory_space<vmem>>, vector<8x128xf32>
    tpu.vector_store %arg3[%c0_8, %c0_9], %21 {strides = array<i32>} : memref<8x128xf32, #tpu.memory_space<vmem>>, vector<8x128xf32>,
    return
  }
  func.func @transform_0(%arg0: i32) -> (i32, i32) {
    %c0_i32 = arith.constant 0 : i32
    %c0_i32_0 = arith.constant 0 : i32
    return %arg0, %c0_i32 : i32, i32
  }
  func.func @transform_1(%arg0: i32) -> (i32, i32) {
    %c0_i32 = arith.constant 0 : i32
    %c0_i32_0 = arith.constant 0 : i32
    %c0_i32_1 = arith.constant 0 : i32
    return %c0_i32, %c0_i32_0 : i32, i32
  }
  func.func @transform_2(%arg0: i32) -> (i32, i32) {
    %c0_i32 = arith.constant 0 : i32
    %c0_i32_0 = arith.constant 0 : i32
    return %arg0, %c0_i32 : i32, i32
  }
}

</mosaic_0001>

<llo_original>
// kernel: tpu_custom_call.1
$region0: #{tpu_custom_call.1}
  #allocation0 [shape = 'u32[]', space=smem, size = 0x4, offset = 0x4, fixed_abs, tag = 'smem constant byte address 0x4 - core index']
  #allocation1 [shape = 'u32[144,128]{1,0:T(1,128)}', space=vmem, size = 0x12000, scoped, tag = 'internal scratch']
  %s0 = inlined_call_operand.hbm [shape: f32[8,16], index: 0, kind: input, shape index: {}]
  %s1 = inlined_call_operand.hbm [shape: f32[16,256], index: 1, kind: input, shape index: {}]
  %s2 = inlined_call_operand.hbm [shape: f32[8,128], index: 2, kind: output, shape index: {}]
  %s3 = sld [smem:[#allocation0]]
  $region26: #{tpu_custom_call.1} parent=0
    _
  %s5 = ssub.s32 1, %s3
  %s6 = scalar_select 0, %s5, %s3
  $region1: #{tpu_custom_call.1} parent=0
    #allocation2 [shape = 'u8[4096]{0}', space=vmem, size = 0x1000, scoped, tag = 'input window, operand 0, single buffered']
    #allocation3 [shape = 's32[1]{0}', space=sflag, size = 0x4, scoped, tag = 'scoped memory for tpu_custom_call.1']
    #allocation4 [shape = 's32[1]{0}', space=sflag, size = 0x4, scoped, tag = 'scoped memory for tpu_custom_call.1']
    #allocation5 [shape = 'u8[16384]{0}', space=vmem, size = 0x4000, scoped, tag = 'input window, operand 1, single buffered']
    #allocation6 [shape = 's32[1]{0}', space=sflag, size = 0x4, scoped, tag = 'scoped memory for tpu_custom_call.1']
    #allocation7 [shape = 'u8[4096]{0}', space=vmem, size = 0x1000, scoped, tag = 'output window, operand 0, single buffered']
    %7 = vsyncpa [#allocation3], 0
    %8 = vsyncpa [#allocation6], 0
    %9 = vsyncpa [#allocation4], 0
    // Predicated region
    $region2: #{tpu_custom_call.1} parent=1 // pred_check
      _
    $region3: #{tpu_custom_call.1} parent=1 // pred_check_branch
      %11 = sbr.rel (0) target = $region5
    $region4: #{tpu_custom_call.1} parent=1 // pred_region
      %s13 = ssub.s32 128, 128
      %14 = vsyncadd [#allocation3], %s13
      %s16 = sshll.u32 [#allocation2], 4
      %s17 = int_to_ptr.vmem [resolvable:$true] %s16
      %19 = dma.hbm_to_vmem [thread:$0]  %s0, 128, %s17, [#allocation3]
    $region5: #{tpu_custom_call.1} parent=1 // pred_fallthru
      _
    // Predicated region
    $region6: #{tpu_custom_call.1} parent=1 // pred_check
      _
    $region7: #{tpu_custom_call.1} parent=1 // pred_check_branch
      %21 = sbr.rel (0) target = $region9
    $region8: #{tpu_custom_call.1} parent=1 // pred_region
      %s23 = ssub.s32 512, 512
      %24 = vsyncadd [#allocation6], %s23
      %s25 = sshll.u32 [#allocation5], 4
      %s26 = int_to_ptr.vmem [resolvable:$true] %s25
      %31 = dma.hbm_to_vmem [thread:$0]  %s1, 512, %s26, [#allocation6], 256, 256, 16
    $region9: #{tpu_custom_call.1} parent=1 // pred_fallthru
      _
    // Predicated region
    $region10: #{tpu_custom_call.1} parent=1 // pred_check
      _
    $region11: #{tpu_custom_call.1} parent=1 // pred_check_branch
      %33 = sbr.rel (0) target = $region13
    $region12: #{tpu_custom_call.1} parent=1 // pred_region
      %34 = dma.done [#allocation3], 128
    $region13: #{tpu_custom_call.1} parent=1 // pred_fallthru
      _
    // Predicated region
    $region14: #{tpu_custom_call.1} parent=1 // pred_check
      _
    $region15: #{tpu_custom_call.1} parent=1 // pred_check_branch
      %36 = sbr.rel (0) target = $region17
    $region16: #{tpu_custom_call.1} parent=1 // pred_region
      %37 = dma.done [#allocation6], 512
    $region17: #{tpu_custom_call.1} parent=1 // pred_fallthru
      _
    %v38 = vld [vmem:[#allocation2] sm:$0xff]
    %v39 = vld [vmem:[#allocation5] sm:$0xff]
    %v40 = vld [vmem:[#allocation5 + $0x8] sm:$0xff]
    %v41 = vld [vmem:[#allocation5 + $0x10] sm:$0xff]
    %v42 = vld [vmem:[#allocation5 + $0x18] sm:$0xff]
    %vm43 = vcmask 130048
    %v45 = vsel %vm43, %v38, 0
    %47 = vmatprep.subr.mxu0 %v40
    %48 = vmatpush1.msra.mxu0 %v39
    %49 = vmatprep.subr.mxu0 %v42
    %50 = vmatpush1.msra.mxu0 %v41
    %51 = vmatprep.subr.mxu0 0.0
    %52 = vmatpush1.msra.mxu0 0.0
    %53 = vmatprep.subr.mxu0 0.0
    %54 = vmatpush1.msra.mxu0 0.0
    %55 = vmatprep.subr.mxu0 0.0
    %56 = vmatpush1.msra.mxu0 0.0
    %57 = vmatprep.subr.mxu0 0.0
    %58 = vmatpush1.msra.mxu0 0.0
    %59 = vmatprep.subr.mxu0 0.0
    %60 = vmatpush1.msra.mxu0 0.0
    %61 = vmatprep.subr.mxu0 0.0
    %62 = vmatpush1.msra.mxu0 0.0
    %63 = vmatprep.subr.mxu0 0.0
    %64 = vmatpush1.msra.mxu0 0.0
    %65 = vmatprep.subr.mxu0 0.0
    %66 = vmatpush1.msra.mxu0 0.0
    %67 = vmatprep.subr.mxu0 0.0
    %68 = vmatpush1.msra.mxu0 0.0
    %69 = vmatprep.subr.mxu0 0.0
    %70 = vmatpush1.msra.mxu0 0.0
    %71 = vmatprep.subr.mxu0 0.0
    %72 = vmatpush1.msra.mxu0 0.0
    %73 = vmatprep.subr.mxu0 0.0
    %74 = vmatpush1.msra.mxu0 0.0
    %75 = vmatprep.subr.mxu0 0.0
    %76 = vmatpush1.msra.mxu0 0.0
    %77 = vmatprep.subr.mxu0 0.0
    %78 = vmatpush1.msra.mxu0 0.0
    %79 = vmatprep.subr.mxu0 0.0
    %80 = vmatpush1.msra.mxu0 0.0
    %81 = vmatprep.subr.mxu0 0.0
    %82 = vmatpush1.msra.mxu0 0.0
    %83 = vmatprep.subr.mxu0 0.0
    %84 = vmatpush1.msra.mxu0 0.0
    %85 = vmatprep.subr.mxu0 0.0
    %86 = vmatpush1.msra.mxu0 0.0
    %87 = vmatprep.subr.mxu0 0.0
    %88 = vmatpush1.msra.mxu0 0.0
    %89 = vmatprep.subr.mxu0 0.0
    %90 = vmatpush1.msra.mxu0 0.0
    %91 = vmatprep.subr.mxu0 0.0
    %92 = vmatpush1.msra.mxu0 0.0
    %93 = vmatprep.subr.mxu0 0.0
    %94 = vmatpush1.msra.mxu0 0.0
    %95 = vmatprep.subr.mxu0 0.0
    %96 = vmatpush1.msra.mxu0 0.0
    %97 = vmatprep.subr.mxu0 0.0
    %98 = vmatpush1.msra.mxu0 0.0
    %99 = vmatprep.subr.mxu0 0.0
    %100 = vmatpush1.msra.mxu0 0.0
    %101 = vmatprep.subr.mxu0 0.0
    %102 = vmatpush1.msra.mxu0 0.0
    %103 = vmatprep.subr.mxu0 0.0
    %104 = vmatpush1.msra.mxu0 0.0
    %105 = vmatprep.subr.mxu0 0.0
    %106 = vmatpush1.msra.mxu0 0.0
    %107 = vmatprep.subr.mxu0 0.0
    %108 = vmatpush1.msra.mxu0 0.0
    %109 = vmatprep.subr.mxu0 0.0
    %110 = vmatpush1.msra.mxu0 0.0
    %111 = vmatprep.mubr.f32.mxu0 0.0
    %112 = vmatmul.mubr.f32.gmra.mrb[0].mxu0 %v45
    %v113 = vpop.f32.mrb[0].mxu0
    %v114 = vadd.f32 0.0, %v113
    %v115 = vpop.f32.mrb[0].mxu0
    %v116 = vadd.f32 0.0, %v115
    %117 = vdwg.mxu0
    %v118 = vxor.u32 %v114, 2147483648
    %v119 = vmul.f32 %v118, 1.442695
    %v120 = vpow.pop %v119
    %v121 = vadd.f32 %v120, 1.0
    %v122 = vrcp.pop %v121
    %v123 = vmul.f32 1.0, %v122
    %v124 = vand.u32 2147483647, %v38
    %v125 = vadd.f32 %v124, 1e-10
    %v126 = vlog2.pop %v125
    %v127 = vmul.f32 %v126, 0.6931472
    %v129 = vsel %vm43, %v127, 0
    %131 = vmatprep.subr.mxu0 0.0
    %132 = vmatpush1.msra.mxu0 %v40
    %133 = vmatprep.subr.mxu0 0.0
    %134 = vmatpush1.msra.mxu0 %v42
    %135 = vmatprep.subr.mxu0 0.0
    %136 = vmatpush1.msra.mxu0 0.0
    %137 = vmatprep.subr.mxu0 0.0
    %138 = vmatpush1.msra.mxu0 0.0
    %139 = vmatprep.subr.mxu0 0.0
    %140 = vmatpush1.msra.mxu0 0.0
    %141 = vmatprep.subr.mxu0 0.0
    %142 = vmatpush1.msra.mxu0 0.0
    %143 = vmatprep.subr.mxu0 0.0
    %144 = vmatpush1.msra.mxu0 0.0
    %145 = vmatprep.subr.mxu0 0.0
    %146 = vmatpush1.msra.mxu0 0.0
    %147 = vmatprep.subr.mxu0 0.0
    %148 = vmatpush1.msra.mxu0 0.0
    %149 = vmatprep.subr.mxu0 0.0
    %150 = vmatpush1.msra.mxu0 0.0
    %151 = vmatprep.subr.mxu0 0.0
    %152 = vmatpush1.msra.mxu0 0.0
    %153 = vmatprep.subr.mxu0 0.0
    %154 = vmatpush1.msra.mxu0 0.0
    %155 = vmatprep.subr.mxu0 0.0
    %156 = vmatpush1.msra.mxu0 0.0
    %157 = vmatprep.subr.mxu0 0.0
    %158 = vmatpush1.msra.mxu0 0.0
    %159 = vmatprep.subr.mxu0 0.0
    %160 = vmatpush1.msra.mxu0 0.0
    %161 = vmatprep.subr.mxu0 0.0
    %162 = vmatpush1.msra.mxu0 0.0
    %163 = vmatprep.subr.mxu0 0.0
    %164 = vmatpush1.msra.mxu0 0.0
    %165 = vmatprep.subr.mxu0 0.0
    %166 = vmatpush1.msra.mxu0 0.0
    %167 = vmatprep.subr.mxu0 0.0
    %168 = vmatpush1.msra.mxu0 0.0
    %169 = vmatprep.subr.mxu0 0.0
    %170 = vmatpush1.msra.mxu0 0.0
    %171 = vmatprep.subr.mxu0 0.0
    %172 = vmatpush1.msra.mxu0 0.0
    %173 = vmatprep.subr.mxu0 0.0
    %174 = vmatpush1.msra.mxu0 0.0
    %175 = vmatprep.subr.mxu0 0.0
    %176 = vmatpush1.msra.mxu0 0.0
    %177 = vmatprep.subr.mxu0 0.0
    %178 = vmatpush1.msra.mxu0 0.0
    %179 = vmatprep.subr.mxu0 0.0
    %180 = vmatpush1.msra.mxu0 0.0
    %181 = vmatprep.subr.mxu0 0.0
    %182 = vmatpush1.msra.mxu0 0.0
    %183 = vmatprep.subr.mxu0 0.0
    %184 = vmatpush1.msra.mxu0 0.0
    %185 = vmatprep.subr.mxu0 0.0
    %186 = vmatpush1.msra.mxu0 0.0
    %187 = vmatprep.subr.mxu0 0.0
    %188 = vmatpush1.msra.mxu0 0.0
    %189 = vmatprep.subr.mxu0 0.0
    %190 = vmatpush1.msra.mxu0 0.0
    %191 = vmatprep.subr.mxu0 0.0
    %192 = vmatpush1.msra.mxu0 0.0
    %193 = vmatprep.subr.mxu0 0.0
    %194 = vmatpush1.msra.mxu0 0.0
    %195 = vmatprep.mubr.f32.mxu0 0.0
    %196 = vmatmul.mubr.f32.gmra.mrb[0].mxu0 %v129
    %v197 = vpop.f32.mrb[0].mxu0
    %v198 = vadd.f32 0.0, %v197
    %v199 = vpop.f32.mrb[0].mxu0
    %200 = vdwg.mxu0
    %v201 = vmul.f32 %v198, 1.442695
    %v202 = vpow.pop %v201
    %v203 = vmul.f32 %v123, %v116
    %v204 = vsub.f32 1.0, %v123
    %v205 = vmul.f32 %v204, %v202
    %v206 = vadd.f32 %v203, %v205
    %207 = vst [vmem:[#allocation7] sm:$0xff] %v206
    // Predicated region
    $region18: #{tpu_custom_call.1} parent=1 // pred_check
      _
    $region19: #{tpu_custom_call.1} parent=1 // pred_check_branch
      %209 = sbr.rel (0) target = $region21
    $region20: #{tpu_custom_call.1} parent=1 // pred_region
      %s211 = ssub.s32 128, 128
      %212 = vsyncadd [#allocation4], %s211
      %s214 = sshll.u32 [#allocation7], 4
      %s215 = int_to_ptr.vmem [resolvable:$true] %s214
      %217 = dma.vmem_to_hbm [thread:$0]  %s215, 128, %s2, [#allocation4]
    $region21: #{tpu_custom_call.1} parent=1 // pred_fallthru
      _
    // Predicated region
    $region22: #{tpu_custom_call.1} parent=1 // pred_check
      _
    $region23: #{tpu_custom_call.1} parent=1 // pred_check_branch
      %219 = sbr.rel (0) target = $region25
    $region24: #{tpu_custom_call.1} parent=1 // pred_region
      %220 = dma.done [#allocation4], 128
    $region25: #{tpu_custom_call.1} parent=1 // pred_fallthru
      _
    %221 = vsyncpa [#allocation3], 1
    %222 = vsyncpa [#allocation6], 1
    %223 = vsyncpa [#allocation4], 1

</llo_original>
